<compile_context>
chip_gen: v5e
topology: v5e:2x2
jax: 0.10.0
libtpu: 0.0.40
codegen_flags: <defaults>
</compile_context>

<pallas_src>
import math
import functools

import jax
import jax.numpy as jnp
from jax.experimental import pallas as pl
from jax.experimental.pallas import tpu as pltpu


def make_pe(max_len: int, d_model: int) -> jnp.ndarray:
    """Sinusoidal 'pos' encoding buffer, exactly like the PyTorch __init__."""
    position = jnp.arange(max_len, dtype=jnp.float32)[:, None]                 # (L, 1)
    div_term = jnp.exp(
        jnp.arange(0, d_model, 2, dtype=jnp.float32) * (-math.log(10000.0) / d_model)
    )                                                                          # (D//2,)
    pe = jnp.zeros((1, max_len, d_model), jnp.float32)
    pe = pe.at[0, :, 0::2].set(jnp.sin(position * div_term))
    pe = pe.at[0, :, 1::2].set(jnp.cos(position * div_term))
    return pe


def _round_up(x: int, m: int) -> int:
    return ((x + m - 1) // m) * m


def _device_kind() -> str:
    try:
        return jax.devices()[0].device_kind.lower()
    except Exception:  # pragma: no cover
        return ""


def _target_block_bytes(kind: str) -> int:
    # v5e: 16 MiB scoped-VMEM default -> keep per-buffer ~1 MiB (already ~85% of
    # HBM roofline).  v6e / v7x: bigger tiles amortize the ~0.35us per-step cost.
    if "v5" in kind or "v4" in kind:
        return 1 << 20
    if "v6" in kind or "v7" in kind:
        return 4 << 20
    return 2 << 20


def _choose_seq_tile(L: int, W: int, itemsize: int, target_bytes: int) -> int:
    """Largest multiple-of-8 tile length dividing L with a (TL, W) buffer <= target."""
    if L % 8 != 0:
        return L  # full-dim block is always legal
    tl = min(L, max(8, ((target_bytes // max(1, W * itemsize)) // 8) * 8))
    while L % tl != 0:
        tl -= 8
    return tl


def _lane_dense_factor(L: int, D: int):
    """Smallest r with (r*D) % 128 == 0 and r | L; None if no such r exists."""
    r = 128 // math.gcd(D, 128)
    if L % r != 0:
        return None
    return r


def _pos_enc_kernel(x_ref, pe_ref, o_ref, *, emb_dim, num_x_tiles, num_tiles, acc_dtype):
    # x_ref : (1, TL, E) VMEM     pe_ref / o_ref : (1, TL, D) VMEM,  E <= D.
    # pe block is resident across the inner batch axis; every output element is
    # written to HBM exactly once (o_ref is never re-read).
    pe = pe_ref[...].astype(acc_dtype)
    d_model = o_ref.shape[-1]

    def write_x_tile():
        x = x_ref[...].astype(acc_dtype)
        if emb_dim == d_model:
            # Single full-tile, lane-dense store.
            o_ref[...] = (x + pe).astype(o_ref.dtype)
        else:
            # Feature tail handled in-kernel (no padded-x pass in HBM): full pe-only
            # store, then overwrite the leading emb_dim lanes.  Both stores hit the
            # same VMEM block; HBM still sees exactly one write of this tile.
            o_ref[...] = pe.astype(o_ref.dtype)
            o_ref[:, :, :emb_dim] = (x + pe[:, :, :emb_dim]).astype(o_ref.dtype)

    def write_pe_tile():
        o_ref[...] = pe.astype(o_ref.dtype)

    if num_x_tiles >= num_tiles:
        write_x_tile()
    else:
        l = pl.program_id(0)

        @pl.when(l < num_x_tiles)
        def _():
            write_x_tile()

        @pl.when(l >= num_x_tiles)
        def _():
            write_pe_tile()
    # TODO(synk): nn.Dropout(p=0.1) is stochastic in train mode; treated as eval-mode
    # identity here (no masking, no scaling).


def positional_encoding_forward(x: jnp.ndarray, pe: jnp.ndarray, seq_tile: int | None = None):
    """x: (B, S, E); pe: (1, max_len, d_model). Returns (B, max_len, d_model) in x.dtype."""
    B, S, E = x.shape
    _, L, D = pe.shape
    assert 1 <= E <= D and 1 <= S <= L, "embedding/seq must fit inside (d_model, max_len)"
    if E == D:
        # non-pad branch in PyTorch requires broadcastable shapes -> seq_len == max_len
        assert S == L, "when emb_dim == d_model the PyTorch forward needs seq_len == max_len"

    kind = _device_kind()
    out_dtype = x.dtype

    # bf16-native VPUs (v6e/v7x): read pe as bf16 (halves its HBM traffic) and keep
    # the add in bf16.  v4/v5e keep the f32 path (no bf16 VALU there).
    bf16_native = not ("v5" in kind or "v4" in kind)
    if out_dtype == jnp.bfloat16 and bf16_native and pe.dtype != jnp.bfloat16:
        pe = pe.astype(jnp.bfloat16)
    if out_dtype == jnp.bfloat16 and pe.dtype == jnp.bfloat16 and bf16_native:
        acc_dtype = jnp.bfloat16
    else:
        acc_dtype = jnp.float32

    out_L, out_D = L, D
    itemsize = max(jnp.dtype(out_dtype).itemsize, jnp.dtype(pe.dtype).itemsize)
    target_bytes = _target_block_bytes(kind)

    # Non-pad branch: pure streaming add.  If d_model < 128, view (L, D) as
    # (L/r, r*D) with r*D a multiple of 128 -> unmasked, lane-dense output stores.
    # These reshapes only merge trailing dims of contiguous arrays (free views).
    reshaped = False
    if E == D:
        r = _lane_dense_factor(L, D)
        if r is not None and r > 1:
            L2, D2 = L // r, r * D
            x = x.reshape(B, L2, D2)
            pe = pe.reshape(1, L2, D2)
            L, D, E, S = L2, D2, D2, L2
            reshaped = True

    TL = seq_tile if seq_tile is not None else _choose_seq_tile(L, D, itemsize, target_bytes)
    assert L % TL == 0 and (TL % 8 == 0 or TL == L)
    num_tiles = L // TL

    # Pad only the sequence axis (zeros == the PyTorch zx init) and only when needed;
    # the feature tail (E < D) never gets materialized in HBM.
    S_pad = _round_up(S, TL)
    if S_pad != S:
        x = jnp.pad(x, ((0, 0), (0, S_pad - S), (0, 0)))
    num_x_tiles = S_pad // TL
    last_x_tile = num_x_tiles - 1
    all_x = num_x_tiles >= num_tiles

    if all_x:
        x_index_map = lambda l, b: (b, l, 0)
    else:
        # Pin the x block index to a constant on pe-only tail tiles: the block index
        # no longer changes between consecutive tail grid steps, so Pallas issues no
        # redundant x copies there.
        x_index_map = lambda l, b, lx=last_x_tile, nx=num_x_tiles: (
            jnp.where(l < nx, b, 0),
            jnp.minimum(l, lx),
            0,
        )

    kernel = functools.partial(
        _pos_enc_kernel,
        emb_dim=E,
        num_x_tiles=num_x_tiles,
        num_tiles=num_tiles,
        acc_dtype=acc_dtype,
    )

    cost = pl.CostEstimate(
        flops=B * L * D,
        transcendentals=0,
        bytes_accessed=(
            x.size * x.dtype.itemsize
            + pe.size * pe.dtype.itemsize
            + B * L * D * jnp.dtype(out_dtype).itemsize
        ),
    )

    if "v7" in kind:
        # v7x: shard the outer seq-tile axis across the two TensorCores.
        dim_sem = (pltpu.CORE_PARALLEL, pltpu.PARALLEL)
    else:
        dim_sem = ("parallel", "parallel")

    out = pl.pallas_call(
        kernel,
        out_shape=jax.ShapeDtypeStruct((B, L, D), out_dtype),
        grid_spec=pltpu.PrefetchScalarGridSpec(
            num_scalar_prefetch=0,
            # seq-tile outer, batch inner -> the pe block index is constant across the
            # inner batch loop, so pe is DMA'd once per seq tile and stays resident.
            grid=(num_tiles, B),
            in_specs=[
                pl.BlockSpec((1, TL, E), x_index_map),
                pl.BlockSpec((1, TL, D), lambda l, b: (0, l, 0)),
            ],
            out_specs=pl.BlockSpec((1, TL, D), lambda l, b: (b, l, 0)),
        ),
        compiler_params=pltpu.CompilerParams(
            dimension_semantics=dim_sem,
            # Double-buffered x+pe+out at <=4 MiB/buffer stays well under 32 MiB,
            # which is a safe scoped-VMEM budget on v5e/v6e/v7x alike.
            vmem_limit_bytes=32 * 1024 * 1024,
        ),
        cost_estimate=cost,
    )(x, pe)

    if reshaped:
        out = out.reshape(B, out_L, out_D)
    return out


def _reference(x, pe):
    B, S, E = x.shape
    _, L, D = pe.shape
    zx = jnp.zeros((B, L, D), jnp.float32)
    zx = zx.at[:, :S, :E].add(x.astype(jnp.float32))
    return zx + pe.astype(jnp.float32)


if __name__ == "__main__":
    key = jax.random.PRNGKey(0)
    k1, k2 = jax.random.split(key)

    # Case 1: pad branch (emb_dim < d_model, seq_len < max_len), default tile.
    batch, seq_len, emb_dim = 2, 8, 16
    d_model, max_len = 32, 16
    x = jax.random.normal(k1, (batch, seq_len, emb_dim), dtype=jnp.float32)
    pe = make_pe(max_len, d_model)

    out = jax.block_until_ready(positional_encoding_forward(x, pe))
    ref = _reference(x, pe)
    assert out.shape == (batch, max_len, d_model)
    assert jnp.allclose(out, ref, atol=1e-5, rtol=1e-5), "mismatch (pad branch)"

    # Case 2: same pad branch but forced multi-tile grid (exercises the pe-only tail
    # tiles and the pinned x block index).
    out2 = jax.block_until_ready(positional_encoding_forward(x, pe, seq_tile=8))
    assert jnp.allclose(out2, ref, atol=1e-5, rtol=1e-5), "mismatch (multi-tile pad branch)"

    # Case 3: non-pad branch (emb_dim == d_model, seq_len == max_len): out = x + pe,
    # lane-dense flattened path (D=32 -> viewed as 128-wide rows).
    x3 = jax.random.normal(k2, (batch, max_len, d_model), dtype=jnp.float32)
    out3 = jax.block_until_ready(positional_encoding_forward(x3, pe))
    assert out3.shape == (batch, max_len, d_model)
    assert jnp.allclose(out3, x3 + pe, atol=1e-5, rtol=1e-5), "mismatch (non-pad branch)"

    print("KERNEL_OK")
</pallas_src>

<mosaic_0001>
module attributes {stable_mosaic.version = 11 : i64} {
  func.func @_pos_enc_kernel(%arg0: i32, %arg1: i32, %arg2: memref<1x16x16xf32, #tpu.memory_space<vmem>>, %arg3: memref<1x16x32xf32, #tpu.memory_space<vmem>>, %arg4: memref<1x16x32xf32, #tpu.memory_space<vmem>>) attributes {dimension_semantics = [#tpu.dimension_semantics<parallel>, #tpu.dimension_semantics<parallel>], iteration_bounds = array<i64: 1, 2>, scalar_prefetch = 0 : i64, scratch_operands = 0 : i64, tpu.core_type = #tpu.core_type<tc>, window_params = [{transform_indices = @transform_0, window_bounds = array<i64: 1, 16, 16>}, {transform_indices = @transform_1, window_bounds = array<i64: 1, 16, 32>}, {transform_indices = @transform_2, window_bounds = array<i64: 1, 16, 32>}]} {
    %c0 = arith.constant 0 : index
    %c0_0 = arith.constant 0 : index
    %c0_1 = arith.constant 0 : index
    %0 = vector.load %arg3[%c0, %c0_0, %c0_1] : memref<1x16x32xf32, #tpu.memory_space<vmem>>, vector<1x16x32xf32>
    %c0_2 = arith.constant 0 : index
    %c0_3 = arith.constant 0 : index
    %c0_4 = arith.constant 0 : index
    %1 = vector.load %arg2[%c0_2, %c0_3, %c0_4] : memref<1x16x16xf32, #tpu.memory_space<vmem>>, vector<1x16x16xf32>
    %c0_5 = arith.constant 0 : index
    %c0_6 = arith.constant 0 : index
    %c0_7 = arith.constant 0 : index
    %2 = vector.load %arg4[%c0_5, %c0_6, %c0_7] : memref<1x16x32xf32, #tpu.memory_space<vmem>>, vector<1x16x32xf32>
    tpu.vector_store %arg4[%c0_5, %c0_6, %c0_7], %0 {strides = array<i32>} : memref<1x16x32xf32, #tpu.memory_space<vmem>>, vector<1x16x32xf32>,
    %3 = vector.extract_strided_slice %0 {offsets = [0, 0, 0], sizes = [1, 16, 16], strides = [1, 1, 1]} : vector<1x16x32xf32> to vector<1x16x16xf32>
    %4 = arith.addf %1, %3 : vector<1x16x16xf32>
    %c0_8 = arith.constant 0 : index
    %c0_9 = arith.constant 0 : index
    %c0_10 = arith.constant 0 : index
    %5 = vector.load %arg4[%c0_8, %c0_9, %c0_10] : memref<1x16x32xf32, #tpu.memory_space<vmem>>, vector<1x16x16xf32>
    tpu.vector_store %arg4[%c0_8, %c0_9, %c0_10], %4 {strides = array<i32>} : memref<1x16x32xf32, #tpu.memory_space<vmem>>, vector<1x16x16xf32>,
    return
  }
  func.func @transform_0(%arg0: i32, %arg1: i32) -> (i32, i32, i32) {
    %c0_i32 = arith.constant 0 : i32
    %c0_i32_0 = arith.constant 0 : i32
    return %arg1, %arg0, %c0_i32 : i32, i32, i32
  }
  func.func @transform_1(%arg0: i32, %arg1: i32) -> (i32, i32, i32) {
    %c0_i32 = arith.constant 0 : i32
    %c0_i32_0 = arith.constant 0 : i32
    %c0_i32_1 = arith.constant 0 : i32
    return %c0_i32, %arg0, %c0_i32_0 : i32, i32, i32
  }
  func.func @transform_2(%arg0: i32, %arg1: i32) -> (i32, i32, i32) {
    %c0_i32 = arith.constant 0 : i32
    %c0_i32_0 = arith.constant 0 : i32
    return %arg1, %arg0, %c0_i32 : i32, i32, i32
  }
}

</mosaic_0001>

<llo_original>
// kernel: tpu_custom_call.1
$region0: #{tpu_custom_call.1}
  #allocation0 [shape = 'u32[]', space=smem, size = 0x4, offset = 0x4, fixed_abs, tag = 'smem constant byte address 0x4 - core index']
  #allocation1 [shape = 'u32[72,128]{1,0:T(1,128)}', space=vmem, size = 0x9000, scoped, tag = 'internal scratch']
  %s0 = inlined_call_operand.hbm [shape: f32[2,16,16], index: 0, kind: input, shape index: {}]
  %s1 = inlined_call_operand.hbm [shape: f32[1,16,32], index: 1, kind: input, shape index: {}]
  %s2 = inlined_call_operand.hbm [shape: f32[2,16,32], index: 2, kind: output, shape index: {}]
  %s3 = sld [smem:[#allocation0]]
  $region49: #{tpu_custom_call.1} parent=0
    _
  %s5 = ssub.s32 1, %s3
  %s6 = scalar_select 0, %s5, %s3
  $region1: #{tpu_custom_call.1} parent=0
    #allocation2 [shape = 'u8[16384]{0}', space=vmem, size = 0x4000, scoped, tag = 'input window, operand 0']
    #allocation3 [shape = 's32[2]{0}', space=sflag, size = 0x8, scoped, tag = 'scoped memory for tpu_custom_call.1']
    #allocation4 [shape = 's32[2]{0}', space=sflag, size = 0x8, scoped, tag = 'scoped memory for tpu_custom_call.1']
    #allocation5 [shape = 'u8[8192]{0}', space=vmem, size = 0x2000, scoped, tag = 'input window, operand 1, single buffered']
    #allocation6 [shape = 's32[1]{0}', space=sflag, size = 0x4, scoped, tag = 'scoped memory for tpu_custom_call.1']
    #allocation7 [shape = 'u8[16384]{0}', space=vmem, size = 0x4000, scoped, tag = 'output window, operand 0']
    %7 = vsyncpa [#allocation3], 0
    %s8 = scalar_lea.sflag [#allocation3], 1
    %9 = vsyncpa %s8, 0
    %10 = vsyncpa [#allocation6], 0
    %11 = vsyncpa [#allocation4], 0
    %s12 = scalar_lea.sflag [#allocation4], 1
    %13 = vsyncpa %s12, 0
    loop: start=0, step=1, limit=4
    $region2: #{tpu_custom_call.1} parent=1 // loop_pre_header
      _
    $region3: #{tpu_custom_call.1} parent=1 // loop_header
      %s15 = sphi 0, %s19
      %p16 = scmp.ge.s32.totalorder %s15, 4
      %s22 = sphi 0, %s34
      %s23 = sphi 0, %s30
      %s24 = sphi 0, %s22
      %s25 = sphi 0, %s23
      %s26 = sphi 0, %s24
      %s27 = sphi 0, %s25
      %s39 = sphi 0, %s41
      %s42 = sphi 0, %s39
      %s43 = sphi 0, %s42
      %s59 = sphi 0, %s43
      %s65 = sphi 0, %s67
      %s68 = sphi 0, %s65
      %s69 = sphi 0, %s68
      %s85 = sphi 0, %s69
      %s93 = sphi 0, %s95
      %s96 = sphi 0, %s93
      %s97 = sphi 0, %s96
      %s113 = sphi 0, %s97
    $region4: #{tpu_custom_call.1} parent=1 // loop_header_branch
      %18 = sbr.rel (%p16) target = $region8
    $region5: #{tpu_custom_call.1} parent=1 // loop_body
      %s20 = ssub.s32 %s15, 1
      %s21 = ssub.s32 %s15, 2
      %s28 = sadd.s32 1, %s23
      %p29 = scmp.ge.s32.totalorder %s28, 2
      %s30 = scalar_select %p29, 0, %s28
      %s31 = sadd.s32 1, %s22
      %s32 = scalar_select %p29, %s31, %s22
      %p33 = scmp.ge.s32.totalorder %s32, 1
      %s34 = scalar_select %p33, 0, %s32
      %s35 = ssub.s32 %s23, %s30
      %s36 = ssub.s32 %s22, %s34
      %s37 = sor.u32 %s35, %s36
      %p38 = scmp.eq.s32.totalorder %s37, 0
      %s40 = sadd.s32 %s39, 1
      %s41 = scalar_select %p38, %s39, %s40
      %p44 = pneg %p38
      %p45 = scmp.eq.s32.totalorder %s15, 1
      %p46 = por %p44, %p45
      %p47 = scmp.ne.s32.totalorder %s39, %s42
      %p48 = scmp.eq.s32.totalorder %s15, 0
      %p49 = por %p47, %p48
      %p50 = scmp.ne.s32.totalorder %s39, %s42
      %p51 = scmp.eq.s32.totalorder %s20, 1
      %p52 = por %p50, %p51
      %p53 = scmp.ne.s32.totalorder %s42, %s43
      %p54 = scmp.eq.s32.totalorder %s20, 0
      %p55 = por %p53, %p54
      %p56 = scmp.ne.s32.totalorder %s42, %s43
      %p57 = scmp.eq.s32.totalorder %s21, 1
      %p58 = por %p56, %p57
      %p60 = scmp.ne.s32.totalorder %s43, %s59
      %p61 = scmp.eq.s32.totalorder %s21, 0
      %p62 = por %p60, %p61
      %s63 = ssub.s32 %s22, %s34
      %p64 = scmp.eq.s32.totalorder %s63, 0
      %s66 = sadd.s32 %s65, 1
      %s67 = scalar_select %p64, %s65, %s66
      %p70 = pneg %p64
      %p71 = scmp.eq.s32.totalorder %s15, 1
      %p72 = por %p70, %p71
      %p73 = scmp.ne.s32.totalorder %s65, %s68
      %p74 = scmp.eq.s32.totalorder %s15, 0
      %p75 = por %p73, %p74
      %p76 = scmp.ne.s32.totalorder %s65, %s68
      %p77 = scmp.eq.s32.totalorder %s20, 1
      %p78 = por %p76, %p77
      %p79 = scmp.ne.s32.totalorder %s68, %s69
      %p80 = scmp.eq.s32.totalorder %s20, 0
      %p81 = por %p79, %p80
      %p82 = scmp.ne.s32.totalorder %s68, %s69
      %p83 = scmp.eq.s32.totalorder %s21, 1
      %p84 = por %p82, %p83
      %p86 = scmp.ne.s32.totalorder %s69, %s85
      %p87 = scmp.eq.s32.totalorder %s21, 0
      %p88 = por %p86, %p87
      %s89 = ssub.s32 %s23, %s30
      %s90 = ssub.s32 %s22, %s34
      %s91 = sor.u32 %s89, %s90
      %p92 = scmp.eq.s32.totalorder %s91, 0
      %s94 = sadd.s32 %s93, 1
      %s95 = scalar_select %p92, %s93, %s94
      %p98 = pneg %p92
      %p99 = scmp.eq.s32.totalorder %s15, 1
      %p100 = por %p98, %p99
      %p101 = scmp.ne.s32.totalorder %s93, %s96
      %p102 = scmp.eq.s32.totalorder %s15, 0
      %p103 = por %p101, %p102
      %p104 = scmp.ne.s32.totalorder %s93, %s96
      %p105 = scmp.eq.s32.totalorder %s20, 1
      %p106 = por %p104, %p105
      %p107 = scmp.ne.s32.totalorder %s96, %s97
      %p108 = scmp.eq.s32.totalorder %s20, 0
      %p109 = por %p107, %p108
      %p110 = scmp.ne.s32.totalorder %s96, %s97
      %p111 = scmp.eq.s32.totalorder %s21, 1
      %p112 = por %p110, %p111
      %p114 = scmp.ne.s32.totalorder %s97, %s113
      %p115 = scmp.eq.s32.totalorder %s21, 0
      %p116 = por %p114, %p115
      %p117 = scmp.le.s32.totalorder 1, %s15
      %p118 = scmp.lt.s32.totalorder %s15, 3
      %p119 = pnand %p117, %p118
      %p120 = pneg %p119
      // Predicated region
      $region9: #{tpu_custom_call.1} parent=5 // pred_check
        _
      $region10: #{tpu_custom_call.1} parent=5 // pred_check_branch
        %122 = sbr.rel (%p119) target = $region12
      $region11: #{tpu_custom_call.1} parent=5 // pred_region
        %s123 = ssub.s32 %s15, 1
        // Predicated region
        $region13: #{tpu_custom_call.1} parent=11 // pred_check
          %p124 = pneg %p81
        $region14: #{tpu_custom_call.1} parent=11 // pred_check_branch
          %126 = sbr.rel (%p124) target = $region16
        $region15: #{tpu_custom_call.1} parent=11 // pred_region
          %s127 = smul.u32 2, %s24
          %129 = vsyncadd [#allocation6], 0
          %s130 = smul.addr %s127, 8
          %s131 = scalar_lea.hbm %s1, %s130
          %s132 = sshll.u32 %s131, 4
          %s133 = int_to_ptr.hbm [resolvable:$true] %s132
          %s134 = sshll.u32 [#allocation5], 4
          %s135 = int_to_ptr.vmem [resolvable:$true] %s134
          %140 = dma.hbm_to_vmem [thread:$0]  %s133, 256, %s135, [#allocation6], 128, 128, 8
        $region16: #{tpu_custom_call.1} parent=11 // pred_fallthru
          _
      $region12: #{tpu_custom_call.1} parent=5 // pred_fallthru
        _
      %p141 = scmp.lt.s32.totalorder %s15, 2
      // Predicated region
      $region17: #{tpu_custom_call.1} parent=5 // pred_check
        %p142 = pneg %p141
      $region18: #{tpu_custom_call.1} parent=5 // pred_check_branch
        %144 = sbr.rel (%p142) target = $region20
      $region19: #{tpu_custom_call.1} parent=5 // pred_region
        // Predicated region
        $region21: #{tpu_custom_call.1} parent=19 // pred_check
          %p145 = pneg %p49
        $region22: #{tpu_custom_call.1} parent=19 // pred_check_branch
          %147 = sbr.rel (%p145) target = $region24
        $region23: #{tpu_custom_call.1} parent=19 // pred_region
          %s148 = sand.u32 %s39, 1
          %s149 = scalar_lea.sflag [#allocation3], %s148
          %s150 = sand.u32 %s39, 1
          %s151 = smul.addr %s150, 16
          %s152 = scalar_lea.vmem [#allocation2], %s151
          %s153 = smul.u32 2, %s22
          %155 = vsyncadd %s149, 0
          %s156 = smul.addr %s23, 2
          %s157 = sadd.s32 %s153, %s156
          %s158 = smul.addr %s157, 8
          %s159 = scalar_lea.hbm %s0, %s158
          %s160 = sshll.u32 %s159, 4
          %s161 = int_to_ptr.hbm [resolvable:$true] %s160
          %s162 = sshll.u32 %s152, 4
          %s163 = int_to_ptr.vmem [resolvable:$true] %s162
          %168 = dma.hbm_to_vmem [thread:$0]  %s161, 256, %s163, %s149, 128, 128, 8
        $region24: #{tpu_custom_call.1} parent=19 // pred_fallthru
          _
      $region20: #{tpu_custom_call.1} parent=5 // pred_fallthru
        _
      %p169 = scmp.le.s32.totalorder 1, %s15
      %p170 = scmp.lt.s32.totalorder %s15, 3
      %p171 = pnand %p169, %p170
      %p172 = pneg %p171
      // Predicated region
      $region25: #{tpu_custom_call.1} parent=5 // pred_check
        _
      $region26: #{tpu_custom_call.1} parent=5 // pred_check_branch
        %174 = sbr.rel (%p171) target = $region28
      $region27: #{tpu_custom_call.1} parent=5 // pred_region
        %s175 = ssub.s32 %s15, 1
        %s176 = sand.u32 %s42, 1
        %s177 = scalar_lea.sflag [#allocation3], %s176
        %s178 = sand.u32 %s42, 1
        %s179 = smul.addr %s178, 16
        %s180 = scalar_lea.vmem [#allocation2], %s179
        // Predicated region
        $region29: #{tpu_custom_call.1} parent=27 // pred_check
          %p181 = pneg %p55
        $region30: #{tpu_custom_call.1} parent=27 // pred_check_branch
          %183 = sbr.rel (%p181) target = $region32
        $region31: #{tpu_custom_call.1} parent=27 // pred_region
          %185 = dma.done %s177, 256
        $region32: #{tpu_custom_call.1} parent=27 // pred_fallthru
          _
        // Predicated region
        $region33: #{tpu_custom_call.1} parent=27 // pred_check
          %p186 = pneg %p81
        $region34: #{tpu_custom_call.1} parent=27 // pred_check_branch
          %188 = sbr.rel (%p186) target = $region36
        $region35: #{tpu_custom_call.1} parent=27 // pred_region
          %190 = dma.done [#allocation6], 256
        $region36: #{tpu_custom_call.1} parent=27 // pred_fallthru
          _
        %s191 = sand.u32 %s42, 1
        %s192 = scalar_lea.sflag [#allocation3], %s191
        %s193 = sand.u32 %s42, 1
        %s194 = smul.addr %s193, 16
        %s195 = scalar_lea.vmem [#allocation2], %s194
        %p196 = pneg %p55
        %p197 = pneg %p52
        %p198 = pneg %p81
        %p199 = pneg %p78
        %p200 = pneg %p109
        %p201 = pneg %p106
        %s202 = sand.u32 %s96, 1
        %s203 = scalar_lea.sflag [#allocation4], %s202
        %s204 = sand.u32 %s96, 1
        %s205 = smul.addr %s204, 16
        %s206 = scalar_lea.vmem [#allocation7], %s205
        %s207 = smul.u32 2, %s24
        %s208 = smul.u32 2, %s24
        %s209 = smul.u32 2, %s24
        %v210 = vld [vmem:[#allocation5] sm:$0xff]
        %v211 = vld [vmem:[#allocation5 + $0x8] sm:$0xff]
        %v212 = vld [vmem:[%s180] sm:$0xff]
        %v213 = vld [vmem:[%s180 + $0x8] sm:$0xff]
        %vm214 = vcmask 261120
        %215 = vst.msk [vmem:[%s206] sm:$0xff] %vm214, %v210
        %216 = vst.msk [vmem:[%s206 + $0x8] sm:$0xff] %vm214, %v211
        %v217 = vadd.f32 %v212, %v210
        %v218 = vadd.f32 %v213, %v211
        %vm219 = vcmask 130048
        %220 = vst.msk [vmem:[%s206] sm:$0xff] %vm219, %v217
        %221 = vst.msk [vmem:[%s206 + $0x8] sm:$0xff] %vm219, %v218
        %s222 = sand.u32 %s96, 1
        %s223 = scalar_lea.sflag [#allocation4], %s222
        %s224 = sand.u32 %s96, 1
        %s225 = smul.addr %s224, 16
        %s226 = scalar_lea.vmem [#allocation7], %s225
        // Predicated region
        $region37: #{tpu_custom_call.1} parent=27 // pred_check
          %p227 = pneg %p106
        $region38: #{tpu_custom_call.1} parent=27 // pred_check_branch
          %229 = sbr.rel (%p227) target = $region40
        $region39: #{tpu_custom_call.1} parent=27 // pred_region
          %s230 = smul.u32 2, %s24
          %232 = vsyncadd %s223, 0
          %s233 = smul.addr %s25, 2
          %s234 = sadd.s32 %s230, %s233
          %s235 = smul.addr %s234, 8
          %s236 = scalar_lea.hbm %s2, %s235
          %s237 = sshll.u32 %s226, 4
          %s238 = int_to_ptr.vmem [resolvable:$true] %s237
          %s239 = sshll.u32 %s236, 4
          %s240 = int_to_ptr.hbm [resolvable:$true] %s239
          %245 = dma.vmem_to_hbm [thread:$0]  %s238, 256, %s240, %s223, 128, 128, 8
        $region40: #{tpu_custom_call.1} parent=27 // pred_fallthru
          _
      $region28: #{tpu_custom_call.1} parent=5 // pred_fallthru
        _
      %p246 = scmp.le.s32.totalorder 2, %s15
      // Predicated region
      $region41: #{tpu_custom_call.1} parent=5 // pred_check
        %p247 = pneg %p246
      $region42: #{tpu_custom_call.1} parent=5 // pred_check_branch
        %249 = sbr.rel (%p247) target = $region44
      $region43: #{tpu_custom_call.1} parent=5 // pred_region
        %s250 = ssub.s32 %s15, 2
        // Predicated region
        $region45: #{tpu_custom_call.1} parent=43 // pred_check
          %p251 = pneg %p112
        $region46: #{tpu_custom_call.1} parent=43 // pred_check_branch
          %253 = sbr.rel (%p251) target = $region48
        $region47: #{tpu_custom_call.1} parent=43 // pred_region
          %s254 = sand.u32 %s97, 1
          %s255 = scalar_lea.sflag [#allocation4], %s254
          %s256 = sand.u32 %s97, 1
          %s257 = smul.addr %s256, 16
          %s258 = scalar_lea.vmem [#allocation7], %s257
          %260 = dma.done %s255, 256
        $region48: #{tpu_custom_call.1} parent=43 // pred_fallthru
          _
      $region44: #{tpu_custom_call.1} parent=5 // pred_fallthru
        _
    $region6: #{tpu_custom_call.1} parent=1 // loop_footer
      %s19 = sadd.s32 1, %s15
    $region7: #{tpu_custom_call.1} parent=1 // loop_footer_branch
      %14 = sbr.rel target = $region3
    $region8: #{tpu_custom_call.1} parent=1 // loop_exit
      _
    %261 = vsyncpa [#allocation3], 1
    %s262 = scalar_lea.sflag [#allocation3], 1
    %263 = vsyncpa %s262, 1
    %264 = vsyncpa [#allocation6], 1
    %265 = vsyncpa [#allocation4], 1
    %s266 = scalar_lea.sflag [#allocation4], 1
    %267 = vsyncpa %s266, 1

</llo_original>
